<compile_context>
chip_gen: v7x
topology: tpu7x:2x2x1
jax: 0.10.0
libtpu: 0.0.40
codegen_flags: <defaults>
</compile_context>

<pallas_src>
import functools

import jax
import jax.numpy as jnp
from jax.experimental import pallas as pl
from jax.experimental.pallas import tpu as pltpu


def _se_gate_kernel(x_ref, w1_ref, w2t_ref, gate_ref, pool_acc, *, hw, ts):
    # x_ref   : (bb, C, ts)  batch-block x channels x spatial tile
    # w1_ref  : (Cr, C)      Linear(C -> Cr) weight (C on lanes)
    # w2t_ref : (Cr, C)      Linear(Cr -> C) weight, transposed (C on lanes)
    # gate_ref: (1, bb, C)   sigmoid gate (written once, at the last spatial tile)
    # pool_acc: (bb, C)      f32 running sum over the spatial axis
    j = pl.program_id(1)
    last = pl.num_programs(1) - 1

    @pl.when(j == 0)
    def _init():
        pool_acc[...] = jnp.zeros_like(pool_acc)

    if hw % ts == 0:
        # All tiles are full: no masking anywhere (static).
        pool_acc[...] += jnp.sum(x_ref[...], axis=-1, dtype=jnp.float32)
    else:
        # Only the last spatial tile has padded (undefined) lanes; mask only there.
        @pl.when(j < last)
        def _acc_full():
            pool_acc[...] += jnp.sum(x_ref[...], axis=-1, dtype=jnp.float32)

        @pl.when(j == last)
        def _acc_masked():
            x = x_ref[...]
            lane = jax.lax.broadcasted_iota(jnp.int32, x.shape, dimension=2)
            x = jnp.where(j * ts + lane < hw, x, jnp.zeros_like(x))
            pool_acc[...] += jnp.sum(x, axis=-1, dtype=jnp.float32)

    @pl.when(j == last)
    def _finalize():
        pooled = pool_acc[...] * (1.0 / hw)                   # (bb, C) f32
        w1 = w1_ref[...].astype(jnp.float32)                  # (Cr, C)
        w2t = w2t_ref[...].astype(jnp.float32)                # (Cr, C)
        # fc1 + ReLU: lane reduce over C (C stays on the lane axis).
        h = jnp.sum(pooled[:, None, :] * w1[None, :, :], axis=-1)   # (bb, Cr)
        h = jnp.maximum(h, 0.0)
        # fc2 + sigmoid: small sublane reduce over Cr; result (bb, C) lane-dense.
        y = jnp.sum(h[:, :, None] * w2t[None, :, :], axis=1)        # (bb, C)
        gate_ref[0] = jax.nn.sigmoid(y).astype(gate_ref.dtype)


def _chip_profile():
    """Best-effort generation query.

    Returns (num_tensorcores, per-step block byte target, input buffer count,
    VMEM-limit cap in bytes)."""
    kind = ""
    try:
        kind = jax.devices()[0].device_kind.lower()
    except Exception:
        pass
    vmem_cap = None
    try:
        vmem_cap = int(pltpu.get_tpu_info().vmem_capacity_bytes)
    except Exception:
        pass
    is_v7 = ("v7" in kind) or (vmem_cap is not None and vmem_cap <= 64 * 1024 * 1024)
    is_v5e = ("v5 lite" in kind) or ("v5e" in kind) or ("v5litepod" in kind)
    if is_v7:
        # 2 TCs, ~3.2 TB/s HBM, 64 MiB VMEM/TC: deeper pipeline, tighter VMEM cap.
        return 2, 2 * 1024 * 1024, 3, 40 * 1024 * 1024
    if is_v5e:
        # 1 TC, ~0.8 TB/s HBM, 16 MiB scoped-VMEM default: modest blocks suffice.
        return 1, 1 * 1024 * 1024, 2, 14 * 1024 * 1024
    # v6e / default: 1 TC, 32 MiB scoped default (128 MiB physical).
    return 1, 2 * 1024 * 1024, 2, 64 * 1024 * 1024


def se_layer(x, w1, w2, *, tile_lanes=None, batch_block=None):
    """x: (B, C, H, W) NCHW; w1: (C//r, C); w2: (C, C//r). Returns (B, C, H, W)."""
    B, C, H, W = x.shape
    Cr = w1.shape[0]
    HW = H * W
    itemsize = jnp.dtype(x.dtype).itemsize

    n_tc, block_target, buf_count, vmem_cap = _chip_profile()

    # --- spatial tile: whole extent if it fits the budget, else a lane-dense
    #     multiple of 128 sized to ~block_target bytes per batch row ---
    row_bytes = C * HW * itemsize
    if tile_lanes is not None:
        ts = int(tile_lanes)
        ts = HW if ts >= HW else max(128, (ts // 128) * 128)
    elif row_bytes <= block_target:
        ts = HW
    else:
        max_lanes = max(128, ((block_target // max(C * itemsize, 1)) // 128) * 128)
        ts = min(HW, max_lanes)
    n_hw = pl.cdiv(HW, ts)

    # --- batch block: group batch rows into one ~block_target-byte DMA ---
    if batch_block is not None:
        bb = max(1, min(B, int(batch_block)))
    else:
        bb = max(1, min(B, block_target // max(C * ts * itemsize, 1)))
        if n_tc >= 2 and B >= 2:
            # v7x only: keep >=2 (prefer 4) batch blocks so both TCs stay fed.
            bb = min(bb, max(1, B // (2 * n_tc)))
    # Ragged batch tails are handled by cdiv blocking: the padded rows of the
    # last block compute garbage gates that get sliced off below (no HBM
    # padding copy of x, no collapse of bb to 1 for prime batch sizes).
    nb = pl.cdiv(B, bb)
    # TODO(synk): for B == 1 on v7x, add a parallel spatial-split grid axis that
    # emits per-split partial pool sums and do the combine + FC in a tiny second step.

    # --- explicit VMEM budget (pipelined x blocks + weights + gate + scratch) ---
    w_itemsize = jnp.dtype(w1.dtype).itemsize
    est = (buf_count * bb * C * ts * itemsize      # pipelined x blocks
           + 2 * bb * C * itemsize                 # double-buffered gate block
           + 2 * 2 * Cr * C * w_itemsize           # resident w1, w2^T
           + bb * C * 4)                           # f32 pool accumulator
    vmem_limit = int(min(vmem_cap, max(8 * 1024 * 1024, 2 * est)))

    x3 = x.reshape(B, C, HW)
    w2t = jnp.transpose(w2)  # (Cr, C): keep C on the lane axis inside the kernel

    x_idx = lambda b, j: (b, 0, j)
    x_spec = pl.BlockSpec((bb, C, ts), x_idx)
    if buf_count != 2 and hasattr(pl, "Buffered"):
        try:  # 3-deep input pipeline on v7x; fall back cleanly on older jax.
            x_spec = pl.BlockSpec((bb, C, ts), x_idx,
                                  pipeline_mode=pl.Buffered(buf_count))
        except TypeError:
            x_spec = pl.BlockSpec((bb, C, ts), x_idx)

    kernel = functools.partial(_se_gate_kernel, hw=HW, ts=ts)

    gate = pl.pallas_call(
        kernel,
        out_shape=jax.ShapeDtypeStruct((nb, bb, C), x.dtype),
        grid=(nb, n_hw),
        in_specs=[
            x_spec,                                         # x tiles
            pl.BlockSpec((Cr, C), lambda b, j: (0, 0)),     # w1,   resident
            pl.BlockSpec((Cr, C), lambda b, j: (0, 0)),     # w2^T, resident
        ],
        out_specs=pl.BlockSpec((1, bb, C), lambda b, j: (b, 0, 0)),
        scratch_shapes=[pltpu.VMEM((bb, C), jnp.float32)],
        compiler_params=pltpu.CompilerParams(
            dimension_semantics=("parallel", "arbitrary"),
            vmem_limit_bytes=vmem_limit,
        ),
    )(x3, w1, w2t)

    gate = gate.reshape(nb * bb, C)[:B]
    # Module semantics: return y.expand_as(x). The broadcast stays outside the
    # kernel so downstream consumers (e.g. the x * y multiply) can fuse it.
    return jnp.broadcast_to(gate.reshape(B, C, 1, 1), (B, C, H, W))


def se_layer_ref(x, w1, w2):
    """Pure-JAX reference mirroring the PyTorch forward."""
    y = jnp.mean(x, axis=(2, 3))                     # (b, c)
    y = jnp.maximum(y @ w1.T, 0.0)                   # (b, c//r)
    y = jax.nn.sigmoid(y @ w2.T)                     # (b, c)
    return jnp.broadcast_to(y[:, :, None, None], x.shape)


if __name__ == "__main__":
    # channel=64, reduction=16 -> hidden=4
    B, C, H, W = 2, 64, 16, 16
    REDUCTION = 16
    Cr = C // REDUCTION

    key = jax.random.PRNGKey(0)
    kx, k1, k2 = jax.random.split(key, 3)
    x = jax.random.normal(kx, (B, C, H, W), dtype=jnp.float32)
    # PyTorch Linear weight shapes: (out, in)
    w1 = jax.random.normal(k1, (Cr, C), dtype=jnp.float32) * 0.1
    w2 = jax.random.normal(k2, (C, Cr), dtype=jnp.float32) * 0.1

    out = jax.block_until_ready(se_layer(x, w1, w2))
    ref = se_layer_ref(x, w1, w2)
    assert out.shape == (B, C, H, W)
    assert jnp.allclose(out, ref, atol=1e-5, rtol=1e-5)

    # Second config: spatial extent not a multiple of 128 and a ragged batch
    # block -> exercises the masked last-tile reduction, multi-tile accumulation,
    # the cdiv batch blocking (padded rows sliced off), and the batched FC path.
    B2, H2, W2 = 3, 20, 20
    x2 = jax.random.normal(jax.random.fold_in(key, 7), (B2, C, H2, W2),
                           dtype=jnp.float32)
    out2 = jax.block_until_ready(
        se_layer(x2, w1, w2, tile_lanes=128, batch_block=2))
    ref2 = se_layer_ref(x2, w1, w2)
    assert jnp.allclose(out2, ref2, atol=1e-5, rtol=1e-5)

    print("KERNEL_OK")
</pallas_src>

<mosaic_0001>
module attributes {stable_mosaic.version = 11 : i64} {
  func.func @_se_gate_kernel(%arg0: i32, %arg1: i32, %arg2: memref<2x64x256xf32, #tpu.memory_space<vmem>>, %arg3: memref<4x64xf32, #tpu.memory_space<vmem>>, %arg4: memref<4x64xf32, #tpu.memory_space<vmem>>, %arg5: memref<1x2x64xf32, #tpu.memory_space<vmem>>, %arg6: memref<2x64xf32, #tpu.memory_space<vmem>>) attributes {dimension_semantics = [#tpu.dimension_semantics<parallel>, #tpu.dimension_semantics<arbitrary>], iteration_bounds = array<i64: 1, 1>, scalar_prefetch = 0 : i64, scratch_operands = 1 : i64, tpu.core_type = #tpu.core_type<tc>, window_params = [{transform_indices = @transform_0, window_bounds = array<i64: 2, 64, 256>}, {pipeline_mode = #tpu.pipeline_mode<synchronous>, transform_indices = @transform_1, window_bounds = array<i64: 4, 64>}, {pipeline_mode = #tpu.pipeline_mode<synchronous>, transform_indices = @transform_2, window_bounds = array<i64: 4, 64>}, {transform_indices = @transform_3, window_bounds = array<i64: 1, 2, 64>}]} {
    %c0_i32 = arith.constant 0 : i32
    %0 = arith.cmpi eq, %arg1, %c0_i32 : i32
    %1 = arith.extui %0 : i1 to i32
    %c0_i32_0 = arith.constant 0 : i32
    %2 = arith.cmpi ne, %1, %c0_i32_0 : i32
    scf.if %2 {
      %cst_9 = arith.constant 0.000000e+00 : f32
      %11 = vector.broadcast %cst_9 : f32 to vector<2x64xf32>
      %c0_10 = arith.constant 0 : index
      %c0_11 = arith.constant 0 : index
      %12 = vector.load %arg6[%c0_10, %c0_11] : memref<2x64xf32, #tpu.memory_space<vmem>>, vector<2x64xf32>
      tpu.vector_store %arg6[%c0_10, %c0_11], %11 {strides = array<i32>} : memref<2x64xf32, #tpu.memory_space<vmem>>, vector<2x64xf32>,
    } else {
    }
    %c0 = arith.constant 0 : index
    %c0_1 = arith.constant 0 : index
    %3 = vector.load %arg6[%c0, %c0_1] : memref<2x64xf32, #tpu.memory_space<vmem>>, vector<2x64xf32>
    %c0_2 = arith.constant 0 : index
    %c0_3 = arith.constant 0 : index
    %c0_4 = arith.constant 0 : index
    %4 = vector.load %arg2[%c0_2, %c0_3, %c0_4] : memref<2x64x256xf32, #tpu.memory_space<vmem>>, vector<2x64x256xf32>
    %cst = arith.constant dense<0.000000e+00> : vector<2x64xf32>
    %5 = vector.multi_reduction <add>, %4, %cst [2] : vector<2x64x256xf32> to vector<2x64xf32>
    %6 = arith.addf %3, %5 : vector<2x64xf32>
    %c0_5 = arith.constant 0 : index
    %c0_6 = arith.constant 0 : index
    %7 = vector.load %arg6[%c0_5, %c0_6] : memref<2x64xf32, #tpu.memory_space<vmem>>, vector<2x64xf32>
    tpu.vector_store %arg6[%c0_5, %c0_6], %6 {strides = array<i32>} : memref<2x64xf32, #tpu.memory_space<vmem>>, vector<2x64xf32>,
    %c0_i32_7 = arith.constant 0 : i32
    %8 = arith.cmpi eq, %arg1, %c0_i32_7 : i32
    %9 = arith.extui %8 : i1 to i32
    %c0_i32_8 = arith.constant 0 : i32
    %10 = arith.cmpi ne, %9, %c0_i32_8 : i32
    scf.if %10 {
      %c0_9 = arith.constant 0 : index
      %c0_10 = arith.constant 0 : index
      %11 = vector.load %arg6[%c0_9, %c0_10] : memref<2x64xf32, #tpu.memory_space<vmem>>, vector<2x64xf32>
      %cst_11 = arith.constant 3.906250e-03 : f32
      %12 = vector.broadcast %cst_11 : f32 to vector<2x64xf32>
      %13 = arith.mulf %11, %12 : vector<2x64xf32>
      %c0_12 = arith.constant 0 : index
      %c0_13 = arith.constant 0 : index
      %14 = vector.load %arg3[%c0_12, %c0_13] : memref<4x64xf32, #tpu.memory_space<vmem>>, vector<4x64xf32>
      %c0_14 = arith.constant 0 : index
      %c0_15 = arith.constant 0 : index
      %15 = vector.load %arg4[%c0_14, %c0_15] : memref<4x64xf32, #tpu.memory_space<vmem>>, vector<4x64xf32>
      %16 = vector.shape_cast %13 : vector<2x64xf32> to vector<2x1x64xf32>
      %17 = vector.shape_cast %14 : vector<4x64xf32> to vector<1x4x64xf32>
      %18 = vector.broadcast %16 : vector<2x1x64xf32> to vector<2x4x64xf32>
      %19 = vector.broadcast %17 : vector<1x4x64xf32> to vector<2x4x64xf32>
      %20 = arith.mulf %18, %19 : vector<2x4x64xf32>
      %cst_16 = arith.constant dense<0.000000e+00> : vector<2x4xf32>
      %21 = vector.multi_reduction <add>, %20, %cst_16 [2] : vector<2x4x64xf32> to vector<2x4xf32>
      %cst_17 = arith.constant 0.000000e+00 : f32
      %22 = vector.broadcast %cst_17 : f32 to vector<2x4xf32>
      %23 = arith.maximumf %21, %22 : vector<2x4xf32>
      %24 = vector.shape_cast %23 : vector<2x4xf32> to vector<2x4x1xf32>
      %25 = vector.shape_cast %15 : vector<4x64xf32> to vector<1x4x64xf32>
      %26 = vector.broadcast %24 : vector<2x4x1xf32> to vector<2x4x64xf32>
      %27 = vector.broadcast %25 : vector<1x4x64xf32> to vector<2x4x64xf32>
      %28 = arith.mulf %26, %27 : vector<2x4x64xf32>
      %cst_18 = arith.constant dense<0.000000e+00> : vector<2x64xf32>
      %29 = vector.multi_reduction <add>, %28, %cst_18 [1] : vector<2x4x64xf32> to vector<2x64xf32>
      %30 = arith.negf %29 : vector<2x64xf32>
      %31 = math.exp %30 : vector<2x64xf32>
      %cst_19 = arith.constant 1.000000e+00 : f32
      %32 = vector.broadcast %cst_19 : f32 to vector<2x64xf32>
      %33 = arith.addf %32, %31 : vector<2x64xf32>
      %34 = arith.divf %32, %33 : vector<2x64xf32>
      %c0_20 = arith.constant 0 : index
      %c0_21 = arith.constant 0 : index
      %c0_22 = arith.constant 0 : index
      %35 = vector.load %arg5[%c0_20, %c0_21, %c0_22] : memref<1x2x64xf32, #tpu.memory_space<vmem>>, vector<1x2x64xf32>
      %36 = vector.shape_cast %35 : vector<1x2x64xf32> to vector<2x64xf32>
      %37 = vector.shape_cast %34 : vector<2x64xf32> to vector<1x2x64xf32>
      tpu.vector_store %arg5[%c0_20, %c0_21, %c0_22], %37 {strides = array<i32>} : memref<1x2x64xf32, #tpu.memory_space<vmem>>, vector<1x2x64xf32>,
    } else {
    }
    return
  }
  func.func @transform_0(%arg0: i32, %arg1: i32) -> (i32, i32, i32) {
    %c0_i32 = arith.constant 0 : i32
    %c0_i32_0 = arith.constant 0 : i32
    return %arg0, %c0_i32, %arg1 : i32, i32, i32
  }
  func.func @transform_1(%arg0: i32, %arg1: i32) -> (i32, i32) {
    %c0_i32 = arith.constant 0 : i32
    %c0_i32_0 = arith.constant 0 : i32
    %c0_i32_1 = arith.constant 0 : i32
    return %c0_i32, %c0_i32_0 : i32, i32
  }
  func.func @transform_2(%arg0: i32, %arg1: i32) -> (i32, i32) {
    %c0_i32 = arith.constant 0 : i32
    %c0_i32_0 = arith.constant 0 : i32
    %c0_i32_1 = arith.constant 0 : i32
    return %c0_i32, %c0_i32_0 : i32, i32
  }
  func.func @transform_3(%arg0: i32, %arg1: i32) -> (i32, i32, i32) {
    %c0_i32 = arith.constant 0 : i32
    %c0_i32_0 = arith.constant 0 : i32
    %c0_i32_1 = arith.constant 0 : i32
    return %arg0, %c0_i32, %c0_i32_0 : i32, i32, i32
  }
}

</mosaic_0001>

<llo_original>
// kernel: tpu_custom_call.1
$region0: #{tpu_custom_call.1}
  #allocation0 [shape = 'u32[]', space=smem, size = 0x4, offset = 0x4, fixed_abs, tag = 'smem constant byte address 0x4 - core index']
  #allocation1 [shape = 'u32[144,128]{1,0:T(1,128)}', space=vmem, size = 0x12000, scoped, tag = 'internal scratch']
  #allocation2 [shape = 'f32[2,64]{1,0:T(2,128)}', space=vmem, size = 0x400, scoped, tag = 'scratch operand']
  %s0 = inlined_call_operand.hbm [shape: f32[2,64,256], index: 0, kind: input, shape index: {}]
  %s1 = inlined_call_operand.hbm [shape: f32[4,64], index: 1, kind: input, shape index: {}]
  %s2 = inlined_call_operand.vmem [shape: f32[4,64], index: 2, kind: input, shape index: {}]
  %s3 = inlined_call_operand.hbm [shape: f32[1,2,64], index: 3, kind: output, shape index: {}]
  %s4 = sld [smem:[#allocation0]]
  $region38: #{tpu_custom_call.1} parent=0
    _
  %s6 = ssub.s32 1, %s4
  %s7 = scalar_select 0, %s6, %s4
  $region1: #{tpu_custom_call.1} parent=0
    #allocation3 [shape = 'u8[131072]{0}', space=vmem, size = 0x20000, scoped, tag = 'input window, operand 0, single buffered']
    #allocation4 [shape = 's32[1]{0}', space=sflag, size = 0x4, scoped, tag = 'scoped memory for tpu_custom_call.1']
    #allocation5 [shape = 's32[1]{0}', space=sflag, size = 0x4, scoped, tag = 'scoped memory for tpu_custom_call.1']
    #allocation6 [shape = 'u8[2048]{0}', space=vmem, size = 0x800, scoped, tag = 'input window, operand 1, single buffered']
    #allocation7 [shape = 's32[1]{0}', space=sflag, size = 0x4, scoped, tag = 'scoped memory for tpu_custom_call.1']
    #allocation8 [shape = 'u8[1024]{0}', space=vmem, size = 0x400, scoped, tag = 'output window, operand 0, single buffered']
    %8 = vsyncpa [#allocation4], 0
    %9 = vsyncpa [#allocation7], 0
    %10 = vsyncpa [#allocation5], 0
    // Predicated region
    $region2: #{tpu_custom_call.1} parent=1 // pred_check
      _
    $region3: #{tpu_custom_call.1} parent=1 // pred_check_branch
      %12 = sbr.rel (0) target = $region5
    $region4: #{tpu_custom_call.1} parent=1 // pred_region
      %s14 = ssub.s32 4096, 4096
      %15 = vsyncadd [#allocation4], %s14
      %s16 = sshll.u32 [#allocation3], 4
      %s17 = int_to_ptr.vmem [resolvable:$true] %s16
      %22 = dma.hbm_to_vmem [thread:$0]  %s0, 4096, %s17, [#allocation4], 256, 256, 16
    $region5: #{tpu_custom_call.1} parent=1 // pred_fallthru
      _
    // Predicated region
    $region6: #{tpu_custom_call.1} parent=1 // pred_check
      _
    $region7: #{tpu_custom_call.1} parent=1 // pred_check_branch
      %24 = sbr.rel (0) target = $region9
    $region8: #{tpu_custom_call.1} parent=1 // pred_region
      %s26 = ssub.s32 64, 64
      %27 = vsyncadd [#allocation7], %s26
      %s29 = sshll.u32 [#allocation6], 4
      %s30 = int_to_ptr.vmem [resolvable:$true] %s29
      %32 = dma.hbm_to_vmem [thread:$0]  %s1, 64, %s30, [#allocation7]
    $region9: #{tpu_custom_call.1} parent=1 // pred_fallthru
      _
    // Predicated region
    $region10: #{tpu_custom_call.1} parent=1 // pred_check
      _
    $region11: #{tpu_custom_call.1} parent=1 // pred_check_branch
      %34 = sbr.rel (0) target = $region13
    $region12: #{tpu_custom_call.1} parent=1 // pred_region
      _
    $region13: #{tpu_custom_call.1} parent=1 // pred_fallthru
      _
    // Predicated region
    $region14: #{tpu_custom_call.1} parent=1 // pred_check
      _
    $region15: #{tpu_custom_call.1} parent=1 // pred_check_branch
      %36 = sbr.rel (0) target = $region17
    $region16: #{tpu_custom_call.1} parent=1 // pred_region
      %37 = dma.done [#allocation4], 4096
    $region17: #{tpu_custom_call.1} parent=1 // pred_fallthru
      _
    // Predicated region
    $region18: #{tpu_custom_call.1} parent=1 // pred_check
      _
    $region19: #{tpu_custom_call.1} parent=1 // pred_check_branch
      %39 = sbr.rel (0) target = $region21
    $region20: #{tpu_custom_call.1} parent=1 // pred_region
      %40 = dma.done [#allocation7], 64
    $region21: #{tpu_custom_call.1} parent=1 // pred_fallthru
      _
    %p41 = scmp.eq.s32.totalorder 0, 0
    // Predicated region
    $region22: #{tpu_custom_call.1} parent=1 // pred_check
      %p42 = pneg %p41
    $region23: #{tpu_custom_call.1} parent=1 // pred_check_branch
      %44 = sbr.rel (%p42) target = $region25
    $region24: #{tpu_custom_call.1} parent=1 // pred_region
      %vm45 = vcmask 517120
      %46 = vst.msk [vmem:[#allocation2] sm:$0x3] %vm45, 0.0
    $region25: #{tpu_custom_call.1} parent=1 // pred_fallthru
      _
    %v47 = vld [vmem:[#allocation2] sm:$0x3]
    %v48 = vld [vmem:[#allocation3] sm:$0xff]
    %v49 = vld [vmem:[#allocation3 + $0x8] sm:$0xff]
    %v50 = vld [vmem:[#allocation3 + $0x10] sm:$0xff]
    %v51 = vld [vmem:[#allocation3 + $0x18] sm:$0xff]
    %v52 = vld [vmem:[#allocation3 + $0x20] sm:$0xff]
    %v53 = vld [vmem:[#allocation3 + $0x28] sm:$0xff]
    %v54 = vld [vmem:[#allocation3 + $0x30] sm:$0xff]
    %v55 = vld [vmem:[#allocation3 + $0x38] sm:$0xff]
    %v56 = vld [vmem:[#allocation3 + $0x40] sm:$0xff]
    %v57 = vld [vmem:[#allocation3 + $0x48] sm:$0xff]
    %v58 = vld [vmem:[#allocation3 + $0x50] sm:$0xff]
    %v59 = vld [vmem:[#allocation3 + $0x58] sm:$0xff]
    %v60 = vld [vmem:[#allocation3 + $0x60] sm:$0xff]
    %v61 = vld [vmem:[#allocation3 + $0x68] sm:$0xff]
    %v62 = vld [vmem:[#allocation3 + $0x70] sm:$0xff]
    %v63 = vld [vmem:[#allocation3 + $0x78] sm:$0xff]
    %v64 = vld [vmem:[#allocation3 + $0x80] sm:$0xff]
    %v65 = vld [vmem:[#allocation3 + $0x88] sm:$0xff]
    %v66 = vld [vmem:[#allocation3 + $0x90] sm:$0xff]
    %v67 = vld [vmem:[#allocation3 + $0x98] sm:$0xff]
    %v68 = vld [vmem:[#allocation3 + $0xa0] sm:$0xff]
    %v69 = vld [vmem:[#allocation3 + $0xa8] sm:$0xff]
    %v70 = vld [vmem:[#allocation3 + $0xb0] sm:$0xff]
    %v71 = vld [vmem:[#allocation3 + $0xb8] sm:$0xff]
    %v72 = vld [vmem:[#allocation3 + $0xc0] sm:$0xff]
    %v73 = vld [vmem:[#allocation3 + $0xc8] sm:$0xff]
    %v74 = vld [vmem:[#allocation3 + $0xd0] sm:$0xff]
    %v75 = vld [vmem:[#allocation3 + $0xd8] sm:$0xff]
    %v76 = vld [vmem:[#allocation3 + $0xe0] sm:$0xff]
    %v77 = vld [vmem:[#allocation3 + $0xe8] sm:$0xff]
    %v78 = vld [vmem:[#allocation3 + $0xf0] sm:$0xff]
    %v79 = vld [vmem:[#allocation3 + $0xf8] sm:$0xff]
    %v80 = vadd.f32 %v48, %v49
    %81 = vadd.xlane.f32.xlu0 %v80
    %v82 = vpop.xlane.xlu0 %81
    %v83 = vadd.f32 %v50, %v51
    %84 = vadd.xlane.f32.xlu0 %v83
    %v85 = vpop.xlane.xlu0 %84
    %v86 = vadd.f32 %v52, %v53
    %87 = vadd.xlane.f32.xlu0 %v86
    %v88 = vpop.xlane.xlu0 %87
    %v89 = vadd.f32 %v54, %v55
    %90 = vadd.xlane.f32.xlu0 %v89
    %v91 = vpop.xlane.xlu0 %90
    %v92 = vadd.f32 %v56, %v57
    %93 = vadd.xlane.f32.xlu0 %v92
    %v94 = vpop.xlane.xlu0 %93
    %v95 = vadd.f32 %v58, %v59
    %96 = vadd.xlane.f32.xlu0 %v95
    %v97 = vpop.xlane.xlu0 %96
    %v98 = vadd.f32 %v60, %v61
    %99 = vadd.xlane.f32.xlu0 %v98
    %v100 = vpop.xlane.xlu0 %99
    %v101 = vadd.f32 %v62, %v63
    %102 = vadd.xlane.f32.xlu0 %v101
    %v103 = vpop.xlane.xlu0 %102
    %v104 = vadd.f32 %v64, %v65
    %105 = vadd.xlane.f32.xlu0 %v104
    %v106 = vpop.xlane.xlu0 %105
    %v107 = vadd.f32 %v66, %v67
    %108 = vadd.xlane.f32.xlu0 %v107
    %v109 = vpop.xlane.xlu0 %108
    %v110 = vadd.f32 %v68, %v69
    %111 = vadd.xlane.f32.xlu0 %v110
    %v112 = vpop.xlane.xlu0 %111
    %v113 = vadd.f32 %v70, %v71
    %114 = vadd.xlane.f32.xlu0 %v113
    %v115 = vpop.xlane.xlu0 %114
    %v116 = vadd.f32 %v72, %v73
    %117 = vadd.xlane.f32.xlu0 %v116
    %v118 = vpop.xlane.xlu0 %117
    %v119 = vadd.f32 %v74, %v75
    %120 = vadd.xlane.f32.xlu0 %v119
    %v121 = vpop.xlane.xlu0 %120
    %v122 = vadd.f32 %v76, %v77
    %123 = vadd.xlane.f32.xlu0 %v122
    %v124 = vpop.xlane.xlu0 %123
    %v125 = vadd.f32 %v78, %v79
    %126 = vadd.xlane.f32.xlu0 %v125
    %v127 = vpop.xlane.xlu0 %126
    %v144 = vlaneseq
    %v145 = vand.u32 %v144, 127
    %v146 = vlaneseq
    %v147 = vshrl.u32 %v146, 7
    %v148 = vsub.s32 %v145, %v147
    %v149 = vrot.slane %v82, %v148
    %v150 = vadd.s32 %v145, 4294967288
    %v151 = vlaneseq
    %v152 = vshrl.u32 %v151, 7
    %v153 = vsub.s32 %v150, %v152
    %v154 = vrot.slane %v85, %v153
    %vm155 = vcmask 130112
    %v156 = vsel %vm155, %v154, %v149
    %v157 = vadd.s32 %v145, 4294967280
    %v158 = vlaneseq
    %v159 = vshrl.u32 %v158, 7
    %v160 = vsub.s32 %v157, %v159
    %v161 = vrot.slane %v88, %v160
    %vm162 = vcmask 195712
    %v163 = vsel %vm162, %v161, %v156
    %v164 = vadd.s32 %v145, 4294967272
    %v165 = vlaneseq
    %v166 = vshrl.u32 %v165, 7
    %v167 = vsub.s32 %v164, %v166
    %v168 = vrot.slane %v91, %v167
    %vm169 = vcmask 261312
    %v170 = vsel %vm169, %v168, %v163
    %v171 = vadd.s32 %v145, 4294967264
    %v172 = vlaneseq
    %v173 = vshrl.u32 %v172, 7
    %v174 = vsub.s32 %v171, %v173
    %v175 = vrot.slane %v94, %v174
    %vm176 = vcmask 326912
    %v177 = vsel %vm176, %v175, %v170
    %v178 = vadd.s32 %v145, 4294967256
    %v179 = vlaneseq
    %v180 = vshrl.u32 %v179, 7
    %v181 = vsub.s32 %v178, %v180
    %v182 = vrot.slane %v97, %v181
    %vm183 = vcmask 392512
    %v184 = vsel %vm183, %v182, %v177
    %v185 = vadd.s32 %v145, 4294967248
    %v186 = vlaneseq
    %v187 = vshrl.u32 %v186, 7
    %v188 = vsub.s32 %v185, %v187
    %v189 = vrot.slane %v100, %v188
    %vm190 = vcmask 458112
    %v191 = vsel %vm190, %v189, %v184
    %v192 = vadd.s32 %v145, 4294967240
    %v193 = vlaneseq
    %v194 = vshrl.u32 %v193, 7
    %v195 = vsub.s32 %v192, %v194
    %v196 = vrot.slane %v103, %v195
    %vm197 = vcmask 523712
    %v198 = vsel %vm197, %v196, %v191
    %v199 = vlaneseq
    %v200 = vshrl.u32 %v199, 7
    %v201 = vsub.s32 %v145, %v200
    %v202 = vrot.slane %v106, %v201
    %v203 = vlaneseq
    %v204 = vshrl.u32 %v203, 7
    %v205 = vsub.s32 %v150, %v204
    %v206 = vrot.slane %v109, %v205
    %v207 = vsel %vm155, %v206, %v202
    %v208 = vlaneseq
    %v209 = vshrl.u32 %v208, 7
    %v210 = vsub.s32 %v157, %v209
    %v211 = vrot.slane %v112, %v210
    %v212 = vsel %vm162, %v211, %v207
    %v213 = vlaneseq
    %v214 = vshrl.u32 %v213, 7
    %v215 = vsub.s32 %v164, %v214
    %v216 = vrot.slane %v115, %v215
    %v217 = vsel %vm169, %v216, %v212
    %v218 = vlaneseq
    %v219 = vshrl.u32 %v218, 7
    %v220 = vsub.s32 %v171, %v219
    %v221 = vrot.slane %v118, %v220
    %v222 = vsel %vm176, %v221, %v217
    %v223 = vlaneseq
    %v224 = vshrl.u32 %v223, 7
    %v225 = vsub.s32 %v178, %v224
    %v226 = vrot.slane %v121, %v225
    %v227 = vsel %vm183, %v226, %v222
    %v228 = vlaneseq
    %v229 = vshrl.u32 %v228, 7
    %v230 = vsub.s32 %v185, %v229
    %v231 = vrot.slane %v124, %v230
    %v232 = vsel %vm190, %v231, %v227
    %v233 = vlaneseq
    %v234 = vshrl.u32 %v233, 7
    %v235 = vsub.s32 %v192, %v234
    %v236 = vrot.slane %v127, %v235
    %v237 = vsel %vm197, %v236, %v232
    %vm238 = vcmask 1041409
    %v239 = vsel %vm238, %v237, %v198
    %v241 = vadd.f32 %v47, %v239
    %vm242 = vcmask 517120
    %243 = vst.msk [vmem:[#allocation2] sm:$0x3] %vm242, %v241
    // Predicated region
    $region26: #{tpu_custom_call.1} parent=1 // pred_check
      %p244 = pneg %p41
    $region27: #{tpu_custom_call.1} parent=1 // pred_check_branch
      %246 = sbr.rel (%p244) target = $region29
    $region28: #{tpu_custom_call.1} parent=1 // pred_region
      %v247 = vld [vmem:[#allocation2] sm:$0x3]
      %v248 = vmul.f32 %v247, 0.00390625
      %v249 = vld [vmem:[#allocation6] sm:$0xf]
      %v250 = vld [vmem:[%s2] sm:$0xf]
      %v253 = vunpack.c.l.s4 1966171168
      %v254 = vunpack.c.0.s8 %v253
      %v255 = vlaneseq
      %v256 = vshrl.u32 %v255, 7
      %v257 = vsub.s32 %v254, %v256
      %v258 = vrot.slane %v248, %v257
      %v259 = vcombine.high %v258, %v258
      %v261 = vunpack.c.l.s4 1966171168
      %v262 = vunpack.c.0.s8 %v261
      %v263 = vlaneseq
      %v264 = vshrl.u32 %v263, 7
      %v265 = vsub.s32 %v262, %v264
      %v266 = vrot.slane %v258, %v265
      %v268 = vunpack.c.l.s4 1966171168
      %v269 = vunpack.c.0.s8 %v268
      %v270 = vlaneseq
      %v271 = vshrl.u32 %v270, 7
      %v272 = vsub.s32 %v269, %v271
      %v273 = vrot.slane %v259, %v272
      %v274 = vlaneseq
      %v275 = vshrl.u32 %v274, 7
      %v276 = vsub.s32 0, %v275
      %v277 = vrot.slane %v266, %v276
      %v278 = vlaneseq
      %v279 = vshrl.u32 %v278, 7
      %v280 = vsub.s32 0, %v279
      %v281 = vrot.slane %v273, %v280
      %v284 = vmul.f32 %v277, %v249
      %v285 = vmul.f32 %v281, %v249
      %vm286 = vcmask 519168
      %v287 = vsel %vm286, %v284, 0.0
      %288 = vadd.xlane.f32.xlu0 %v287
      %v289 = vpop.xlane.xlu0 %288
      %v290 = vsel %vm286, %v285, 0.0
      %291 = vadd.xlane.f32.xlu0 %v290
      %v292 = vpop.xlane.xlu0 %291
      %v293 = vmax.f32 %v289, 0.0
      %v294 = vmax.f32 %v292, 0.0
      %v295 = vmul.f32 %v293, %v250
      %v296 = vmul.f32 %v294, %v250
      %v297 = vsel %vm286, %v295, 0.0
      %v298 = vrot.slane %v297, 4
      %v299 = vadd.f32 %v297, %v298
      %v300 = vrot.slane %v299, 2
      %v301 = vadd.f32 %v299, %v300
      %v302 = vrot.slane %v301, 1
      %v303 = vadd.f32 %v301, %v302
      %v304 = vsel %vm286, %v296, 0.0
      %v305 = vrot.slane %v304, 4
      %v306 = vadd.f32 %v304, %v305
      %v307 = vrot.slane %v306, 2
      %v308 = vadd.f32 %v306, %v307
      %v309 = vrot.slane %v308, 1
      %v310 = vadd.f32 %v308, %v309
      %v311 = vxor.u32 %v303, 2147483648
      %v312 = vxor.u32 %v310, 2147483648
      %v313 = vmul.f32 %v311, 1.442695
      %v314 = vpow.pop %v313
      %v315 = vmul.f32 %v312, 1.442695
      %v316 = vpow.pop %v315
      %v317 = vadd.f32 %v314, 1.0
      %v318 = vadd.f32 %v316, 1.0
      %v319 = vrcp.pop %v317
      %v320 = vmul.f32 1.0, %v319
      %v321 = vrcp.pop %v318
      %v322 = vmul.f32 1.0, %v321
      %v325 = vsel %vm238, %v322, %v320
      %327 = vst.msk [vmem:[#allocation8] sm:$0x3] %vm242, %v325
    $region29: #{tpu_custom_call.1} parent=1 // pred_fallthru
      _
    // Predicated region
    $region30: #{tpu_custom_call.1} parent=1 // pred_check
      _
    $region31: #{tpu_custom_call.1} parent=1 // pred_check_branch
      %329 = sbr.rel (0) target = $region33
    $region32: #{tpu_custom_call.1} parent=1 // pred_region
      %s331 = ssub.s32 32, 32
      %332 = vsyncadd [#allocation5], %s331
      %s334 = sshll.u32 [#allocation8], 4
      %s335 = int_to_ptr.vmem [resolvable:$true] %s334
      %337 = dma.vmem_to_hbm [thread:$0]  %s335, 32, %s3, [#allocation5]
    $region33: #{tpu_custom_call.1} parent=1 // pred_fallthru
      _
    // Predicated region
    $region34: #{tpu_custom_call.1} parent=1 // pred_check
      _
    $region35: #{tpu_custom_call.1} parent=1 // pred_check_branch
      %339 = sbr.rel (0) target = $region37
    $region36: #{tpu_custom_call.1} parent=1 // pred_region
      %340 = dma.done [#allocation5], 32
    $region37: #{tpu_custom_call.1} parent=1 // pred_fallthru
      _
    %341 = vsyncpa [#allocation4], 1
    %342 = vsyncpa [#allocation7], 1
    %343 = vsyncpa [#allocation5], 1

</llo_original>
